<compile_context>
chip_gen: v5e
topology: v5e:2x2
jax: 0.10.0
libtpu: 0.0.40
codegen_flags: <defaults>
</compile_context>

<pallas_src>
import functools

import jax
import jax.numpy as jnp
from jax.experimental import pallas as pl
from jax.experimental.pallas import tpu as pltpu


_MAX_LANE_TILE = 4096
_LANE_PAD_BYTES = 128 * 4  # one f32 lane-padded row in VMEM


def _vmem_capacity_bytes():
    try:
        info = pltpu.get_tpu_info()
        cap = getattr(info, "vmem_capacity_bytes", None)
        if cap:
            return int(cap)
    except Exception:
        pass
    return 64 * 1024 * 1024  # conservative fallback (v7x-sized); safe on v5e/v6e too


def _pick_lane_tile(hw, c, itemsize, training, capacity):
    budget = int(capacity * 0.45)
    # lane-padded fixed blocks: packed params (x2 buf) [+ stat out (x2) + 2 scratch rows if training]
    fixed = (6 if training else 2) * c * _LANE_PAD_BYTES
    per_lane = 4 * c * itemsize  # x tile + y tile, double-buffered
    cap = (budget - fixed) // per_lane
    cap = max(128, min(_MAX_LANE_TILE, (cap // 128) * 128))
    # tile either equals the full HW dim or is a multiple of 128 (Mosaic block constraint)
    return hw if hw <= cap else cap


def _vmem_limit_bytes(c, tile, itemsize, training, capacity):
    block = c * tile * itemsize
    need = 4 * block + 2 * c * _LANE_PAD_BYTES          # x/y double-buffered + packed params
    if training:
        need += 4 * c * _LANE_PAD_BYTES                 # stat output (x2 buf) + 2 scratch rows
    limit = int(need * 1.25) + (4 << 20)
    limit = max(limit, 32 << 20)                        # keep v5e above its 16 MiB default
    limit = min(limit, int(capacity * 0.9))             # stay inside v7x's 64 MiB physical VMEM
    return int(limit)


# ----------------------------- Pallas kernels ------------------------------


def _bn_train_kernel(x_ref, p_ref, y_ref, stat_ref, sum_sc, sq_sc, *, hw, tile, ragged):
    # x_ref / y_ref: (C, tile); p_ref: (C, 3) packed [scale, shift, center];
    # stat_ref: (C, 2) per-(batch, split) partial [shifted sum, shifted sum of squares];
    # sum_sc / sq_sc: (C, 128) f32 accumulators (128-lane slices of the tile folded in).
    s = pl.program_id(1)
    j = pl.program_id(2)
    n_inner = pl.num_programs(2)
    last_s = pl.num_programs(1) - 1
    last_j = n_inner - 1

    @pl.when(j == 0)
    def _():
        sum_sc[...] = jnp.zeros_like(sum_sc)
        sq_sc[...] = jnp.zeros_like(sq_sc)

    p = p_ref[...]
    scale = p[:, 0:1]
    shift = p[:, 1:2]
    center = p[:, 2:3]

    x = x_ref[...]
    # inference-style normalization with running stats (scale/shift precomputed in wrapper)
    y_ref[...] = (x * scale + shift).astype(y_ref.dtype)

    xf = x.astype(jnp.float32)

    # static 128-lane slice plan to fold the tile into the (C, 128) accumulators
    slices = []
    off = 0
    while off < tile:
        w = min(128, tile - off)
        slices.append((off, w))
        off += w

    def accum(masked):
        if masked:
            tile_base = (s * n_inner + j) * tile
        for off_, w in slices:
            d = xf[:, off_:off_ + w] - center
            if masked:
                lane = jax.lax.broadcasted_iota(jnp.int32, d.shape, 1)
                d = jnp.where(tile_base + off_ + lane < hw, d, 0.0)
            if w == 128:
                sum_sc[...] += d
                sq_sc[...] += d * d
            else:
                sum_sc[:, :w] += d
                sq_sc[:, :w] += d * d

    if ragged:
        is_last_tile = jnp.logical_and(s == last_s, j == last_j)

        @pl.when(is_last_tile)
        def _():
            accum(True)

        @pl.when(jnp.logical_not(is_last_tile))
        def _():
            accum(False)
    else:
        accum(False)

    @pl.when(j == last_j)
    def _():
        psum = jnp.sum(sum_sc[...], axis=-1, keepdims=True)
        psq = jnp.sum(sq_sc[...], axis=-1, keepdims=True)
        stat_ref[...] = jnp.concatenate([psum, psq], axis=-1)


def _bn_eval_kernel(x_ref, p_ref, y_ref):
    p = p_ref[...]
    y_ref[...] = (x_ref[...] * p[:, 0:1] + p[:, 1:2]).astype(y_ref.dtype)


# ------------------------------ pallas_call wrappers -------------------------


def _bn_train_pallas(x3, params, *, tile, n_split, vmem_limit):
    B, C, HW = x3.shape
    n_j = pl.cdiv(HW, tile)
    assert n_j % n_split == 0
    n_inner = n_j // n_split
    ragged = (HW % tile) != 0
    itemsize = jnp.dtype(x3.dtype).itemsize
    cost = pl.CostEstimate(
        flops=8 * B * C * HW,
        transcendentals=0,
        bytes_accessed=2 * B * C * HW * itemsize + 3 * C * 4 + B * n_split * C * 2 * 4,
    )
    kernel = functools.partial(_bn_train_kernel, hw=HW, tile=tile, ragged=ragged)
    return pl.pallas_call(
        kernel,
        out_shape=(
            jax.ShapeDtypeStruct((B, C, HW), x3.dtype),
            jax.ShapeDtypeStruct((B, n_split, C, 2), jnp.float32),
        ),
        grid_spec=pltpu.PrefetchScalarGridSpec(
            num_scalar_prefetch=0,
            grid=(B, n_split, n_inner),
            in_specs=[
                pl.BlockSpec((None, C, tile), lambda b, s, j: (b, 0, s * n_inner + j)),
                pl.BlockSpec((C, 3), lambda b, s, j: (0, 0)),
            ],
            out_specs=[
                pl.BlockSpec((None, C, tile), lambda b, s, j: (b, 0, s * n_inner + j)),
                pl.BlockSpec((None, None, C, 2), lambda b, s, j: (b, s, 0, 0)),
            ],
            scratch_shapes=[
                pltpu.VMEM((C, 128), jnp.float32),
                pltpu.VMEM((C, 128), jnp.float32),
            ],
        ),
        compiler_params=pltpu.CompilerParams(
            dimension_semantics=("parallel", "parallel", "arbitrary"),
            vmem_limit_bytes=vmem_limit,
        ),
        cost_estimate=cost,
    )(x3, params)


def _bn_eval_pallas(x3, params, *, tile, vmem_limit):
    B, C, HW = x3.shape
    n_j = pl.cdiv(HW, tile)
    itemsize = jnp.dtype(x3.dtype).itemsize
    cost = pl.CostEstimate(
        flops=2 * B * C * HW,
        transcendentals=0,
        bytes_accessed=2 * B * C * HW * itemsize + 3 * C * 4,
    )
    return pl.pallas_call(
        _bn_eval_kernel,
        out_shape=jax.ShapeDtypeStruct((B, C, HW), x3.dtype),
        grid_spec=pltpu.PrefetchScalarGridSpec(
            num_scalar_prefetch=0,
            grid=(B, n_j),
            in_specs=[
                pl.BlockSpec((None, C, tile), lambda b, j: (b, 0, j)),
                pl.BlockSpec((C, 3), lambda b, j: (0, 0)),
            ],
            out_specs=pl.BlockSpec((None, C, tile), lambda b, j: (b, 0, j)),
        ),
        compiler_params=pltpu.CompilerParams(
            dimension_semantics=("parallel", "parallel"),
            vmem_limit_bytes=vmem_limit,
        ),
        cost_estimate=cost,
    )(x3, params)


# ------------------------------ public forward --------------------------------


def async_batchnorm_forward(
    x,
    running_mean,
    running_var,
    weight,
    bias,
    *,
    momentum=0.9,
    eps=1e-5,
    whiten=True,
    training=True,
    _force_tile=None,  # testing hook only
):
    """AsyncBatchNorm.forward for channel_first NCHW input (single process / dist not
    initialized, gradient_accumulation_steps=1). Returns (y, new_running_mean, new_running_var)."""
    B, C, H, W = x.shape
    HW = H * W
    N = B * HW
    if training and B == 1:
        raise NotImplementedError(
            "AsyncBatchNorm batch_size=1 requires syncing features instead of stats")

    # contiguous view of NCHW — no transpose / extra HBM traffic
    x3 = x.reshape(B, C, HW)

    eff_eps = eps if whiten else 0.0
    rm = running_mean.astype(jnp.float32)
    rv = running_var.astype(jnp.float32)
    w = weight.astype(jnp.float32)
    b = bias.astype(jnp.float32)
    scale = w * jax.lax.rsqrt(rv + eff_eps)
    shift = b - rm * scale
    # pack scale/shift/center into a single (C, 3) f32 block -> one lane-padded VMEM buffer
    params = jnp.stack([scale, shift, rm], axis=-1)

    itemsize = jnp.dtype(x.dtype).itemsize
    capacity = _vmem_capacity_bytes()
    tile = _force_tile if _force_tile is not None else _pick_lane_tile(
        HW, C, itemsize, training, capacity)
    vmem_limit = _vmem_limit_bytes(C, tile, itemsize, training, capacity)

    if training:
        n_j = pl.cdiv(HW, tile)
        # split the HW reduction across both v7x TensorCores when it divides evenly
        n_split = 2 if (n_j >= 2 and n_j % 2 == 0) else 1
        y3, stats = _bn_train_pallas(x3, params, tile=tile, n_split=n_split,
                                     vmem_limit=vmem_limit)
        s = jnp.sum(stats[..., 0], axis=(0, 1))   # (C,) shifted sum over the whole batch
        ss = jnp.sum(stats[..., 1], axis=(0, 1))  # (C,) shifted sum of squares
        dmean = s / N
        batch_mean = rm + dmean
        batch_var = jnp.maximum(ss / N - dmean * dmean, 0.0)   # biased (unbiased=False)
        new_mean = (rm * momentum + (1.0 - momentum) * batch_mean).astype(running_mean.dtype)
        if whiten:
            new_var = (rv * momentum + (1.0 - momentum) * batch_var).astype(running_var.dtype)
        else:
            new_var = running_var
    else:
        y3 = _bn_eval_pallas(x3, params, tile=tile, vmem_limit=vmem_limit)
        new_mean, new_var = running_mean, running_var

    # TODO(synk): the torch.distributed async all_gather / multi-step gradient-accumulation
    # stat-pooling path has no single-device Pallas equivalent; single-process semantics only.
    return y3.reshape(B, C, H, W), new_mean, new_var


# ---------------------------------- main -------------------------------------

if __name__ == "__main__":
    def _reference(x, running_mean, running_var, weight, bias, momentum, eps):
        C = x.shape[1]
        mean_b = running_mean[None, :, None, None]
        var_b = running_var[None, :, None, None]
        y_ref = (x - mean_b) / jnp.sqrt(var_b + eps) * weight[None, :, None, None] \
                + bias[None, :, None, None]
        x_flat = jnp.transpose(x, (1, 0, 2, 3)).reshape(C, -1)
        bm_ref = x_flat.mean(axis=1)
        bv_ref = x_flat.var(axis=1)
        nm_ref = running_mean * momentum + (1 - momentum) * bm_ref
        nv_ref = running_var * momentum + (1 - momentum) * bv_ref
        return y_ref, nm_ref, nv_ref

    key = jax.random.PRNGKey(0)
    momentum, eps = 0.9, 1e-5

    # Test 1: nominal small shape (dim = 4 channels), full-tile path
    B, C, H, W = 2, 4, 16, 16
    x = jax.random.normal(key, (B, C, H, W), dtype=jnp.float32)
    running_mean = jnp.zeros((C,), jnp.float32)
    running_var = jnp.ones((C,), jnp.float32)
    weight = jnp.ones((C,), jnp.float32)
    bias = jnp.zeros((C,), jnp.float32)

    y, new_mean, new_var = async_batchnorm_forward(
        x, running_mean, running_var, weight, bias,
        momentum=momentum, eps=eps, whiten=True, training=True)
    y_eval, _, _ = async_batchnorm_forward(
        x, running_mean, running_var, weight, bias,
        momentum=momentum, eps=eps, whiten=True, training=False)
    jax.block_until_ready((y, new_mean, new_var, y_eval))

    y_ref, nm_ref, nv_ref = _reference(x, running_mean, running_var, weight, bias, momentum, eps)
    assert jnp.allclose(y, y_ref, atol=1e-5, rtol=1e-5)
    assert jnp.allclose(y_eval, y_ref, atol=1e-5, rtol=1e-5)
    assert jnp.allclose(new_mean, nm_ref, atol=1e-5, rtol=1e-5)
    assert jnp.allclose(new_var, nv_ref, atol=1e-4, rtol=1e-4)

    # Test 2: exercise the split reduction axis + ragged final tile (forced 128-lane tile)
    B2, C2, H2, W2 = 2, 4, 20, 20  # HW = 400 -> 4 tiles of 128, last one ragged
    key2 = jax.random.PRNGKey(1)
    x2 = jax.random.normal(key2, (B2, C2, H2, W2), dtype=jnp.float32)
    rm2 = 0.1 * jnp.arange(C2, dtype=jnp.float32)
    rv2 = 1.0 + 0.05 * jnp.arange(C2, dtype=jnp.float32)
    w2 = 1.0 + 0.01 * jnp.arange(C2, dtype=jnp.float32)
    b2 = 0.2 * jnp.arange(C2, dtype=jnp.float32)

    y2, nm2, nv2 = async_batchnorm_forward(
        x2, rm2, rv2, w2, b2, momentum=momentum, eps=eps, whiten=True, training=True,
        _force_tile=128)
    jax.block_until_ready((y2, nm2, nv2))

    y2_ref, nm2_ref, nv2_ref = _reference(x2, rm2, rv2, w2, b2, momentum, eps)
    assert jnp.allclose(y2, y2_ref, atol=1e-5, rtol=1e-5)
    assert jnp.allclose(nm2, nm2_ref, atol=1e-5, rtol=1e-5)
    assert jnp.allclose(nv2, nv2_ref, atol=1e-4, rtol=1e-4)

    print("KERNEL_OK")
</pallas_src>

<mosaic_0001>
module attributes {stable_mosaic.version = 11 : i64} {
  func.func @_bn_train_kernel(%arg0: i32, %arg1: i32, %arg2: i32, %arg3: memref<1x4x256xf32, #tpu.memory_space<vmem>>, %arg4: memref<4x3xf32, #tpu.memory_space<vmem>>, %arg5: memref<1x4x256xf32, #tpu.memory_space<vmem>>, %arg6: memref<1x1x4x2xf32, #tpu.memory_space<vmem>>, %arg7: memref<4x128xf32, #tpu.memory_space<vmem>>, %arg8: memref<4x128xf32, #tpu.memory_space<vmem>>) attributes {dimension_semantics = [#tpu.dimension_semantics<parallel>, #tpu.dimension_semantics<parallel>, #tpu.dimension_semantics<arbitrary>], iteration_bounds = array<i64: 2, 1, 1>, scalar_prefetch = 0 : i64, scratch_operands = 2 : i64, tpu.core_type = #tpu.core_type<tc>, window_params = [{transform_indices = @transform_0, window_bounds = array<i64: 1, 4, 256>}, {pipeline_mode = #tpu.pipeline_mode<synchronous>, transform_indices = @transform_1, window_bounds = array<i64: 4, 3>}, {transform_indices = @transform_2, window_bounds = array<i64: 1, 4, 256>}, {transform_indices = @transform_3, window_bounds = array<i64: 1, 1, 4, 2>}]} {
    %c0_i32 = arith.constant 0 : i32
    %0 = arith.cmpi eq, %arg2, %c0_i32 : i32
    %1 = arith.extui %0 : i1 to i32
    %c0_i32_0 = arith.constant 0 : i32
    %2 = arith.cmpi ne, %1, %c0_i32_0 : i32
    scf.if %2 {
      %cst = arith.constant 0.000000e+00 : f32
      %39 = vector.broadcast %cst : f32 to vector<4x128xf32>
      %c0_26 = arith.constant 0 : index
      %c0_27 = arith.constant 0 : index
      %40 = vector.load %arg7[%c0_26, %c0_27] : memref<4x128xf32, #tpu.memory_space<vmem>>, vector<4x128xf32>
      tpu.vector_store %arg7[%c0_26, %c0_27], %39 {strides = array<i32>} : memref<4x128xf32, #tpu.memory_space<vmem>>, vector<4x128xf32>,
      %cst_28 = arith.constant 0.000000e+00 : f32
      %41 = vector.broadcast %cst_28 : f32 to vector<4x128xf32>
      %c0_29 = arith.constant 0 : index
      %c0_30 = arith.constant 0 : index
      %42 = vector.load %arg8[%c0_29, %c0_30] : memref<4x128xf32, #tpu.memory_space<vmem>>, vector<4x128xf32>
      tpu.vector_store %arg8[%c0_29, %c0_30], %41 {strides = array<i32>} : memref<4x128xf32, #tpu.memory_space<vmem>>, vector<4x128xf32>,
    } else {
    }
    %c0 = arith.constant 0 : index
    %c0_1 = arith.constant 0 : index
    %3 = vector.load %arg4[%c0, %c0_1] : memref<4x3xf32, #tpu.memory_space<vmem>>, vector<4x3xf32>
    %4 = vector.extract_strided_slice %3 {offsets = [0, 0], sizes = [4, 1], strides = [1, 1]} : vector<4x3xf32> to vector<4x1xf32>
    %5 = vector.extract_strided_slice %3 {offsets = [0, 1], sizes = [4, 1], strides = [1, 1]} : vector<4x3xf32> to vector<4x1xf32>
    %6 = vector.extract_strided_slice %3 {offsets = [0, 2], sizes = [4, 1], strides = [1, 1]} : vector<4x3xf32> to vector<4x1xf32>
    %c0_2 = arith.constant 0 : index
    %c0_3 = arith.constant 0 : index
    %c0_4 = arith.constant 0 : index
    %7 = vector.load %arg3[%c0_2, %c0_3, %c0_4] : memref<1x4x256xf32, #tpu.memory_space<vmem>>, vector<1x4x256xf32>
    %8 = vector.shape_cast %7 : vector<1x4x256xf32> to vector<4x256xf32>
    %9 = vector.broadcast %4 : vector<4x1xf32> to vector<4x256xf32>
    %10 = arith.mulf %8, %9 : vector<4x256xf32>
    %11 = vector.broadcast %5 : vector<4x1xf32> to vector<4x256xf32>
    %12 = arith.addf %10, %11 : vector<4x256xf32>
    %c0_5 = arith.constant 0 : index
    %c0_6 = arith.constant 0 : index
    %c0_7 = arith.constant 0 : index
    %13 = vector.load %arg5[%c0_5, %c0_6, %c0_7] : memref<1x4x256xf32, #tpu.memory_space<vmem>>, vector<1x4x256xf32>
    %14 = vector.shape_cast %13 : vector<1x4x256xf32> to vector<4x256xf32>
    %15 = vector.shape_cast %12 : vector<4x256xf32> to vector<1x4x256xf32>
    tpu.vector_store %arg5[%c0_5, %c0_6, %c0_7], %15 {strides = array<i32>} : memref<1x4x256xf32, #tpu.memory_space<vmem>>, vector<1x4x256xf32>,
    %16 = vector.extract_strided_slice %8 {offsets = [0, 0], sizes = [4, 128], strides = [1, 1]} : vector<4x256xf32> to vector<4x128xf32>
    %17 = vector.broadcast %6 : vector<4x1xf32> to vector<4x128xf32>
    %18 = arith.subf %16, %17 : vector<4x128xf32>
    %c0_8 = arith.constant 0 : index
    %c0_9 = arith.constant 0 : index
    %19 = vector.load %arg7[%c0_8, %c0_9] : memref<4x128xf32, #tpu.memory_space<vmem>>, vector<4x128xf32>
    %20 = arith.addf %19, %18 : vector<4x128xf32>
    %c0_10 = arith.constant 0 : index
    %c0_11 = arith.constant 0 : index
    %21 = vector.load %arg7[%c0_10, %c0_11] : memref<4x128xf32, #tpu.memory_space<vmem>>, vector<4x128xf32>
    tpu.vector_store %arg7[%c0_10, %c0_11], %20 {strides = array<i32>} : memref<4x128xf32, #tpu.memory_space<vmem>>, vector<4x128xf32>,
    %c0_12 = arith.constant 0 : index
    %c0_13 = arith.constant 0 : index
    %22 = vector.load %arg8[%c0_12, %c0_13] : memref<4x128xf32, #tpu.memory_space<vmem>>, vector<4x128xf32>
    %23 = arith.mulf %18, %18 : vector<4x128xf32>
    %24 = arith.addf %22, %23 : vector<4x128xf32>
    %c0_14 = arith.constant 0 : index
    %c0_15 = arith.constant 0 : index
    %25 = vector.load %arg8[%c0_14, %c0_15] : memref<4x128xf32, #tpu.memory_space<vmem>>, vector<4x128xf32>
    tpu.vector_store %arg8[%c0_14, %c0_15], %24 {strides = array<i32>} : memref<4x128xf32, #tpu.memory_space<vmem>>, vector<4x128xf32>,
    %26 = vector.extract_strided_slice %8 {offsets = [0, 128], sizes = [4, 128], strides = [1, 1]} : vector<4x256xf32> to vector<4x128xf32>
    %27 = vector.broadcast %6 : vector<4x1xf32> to vector<4x128xf32>
    %28 = arith.subf %26, %27 : vector<4x128xf32>
    %c0_16 = arith.constant 0 : index
    %c0_17 = arith.constant 0 : index
    %29 = vector.load %arg7[%c0_16, %c0_17] : memref<4x128xf32, #tpu.memory_space<vmem>>, vector<4x128xf32>
    %30 = arith.addf %29, %28 : vector<4x128xf32>
    %c0_18 = arith.constant 0 : index
    %c0_19 = arith.constant 0 : index
    %31 = vector.load %arg7[%c0_18, %c0_19] : memref<4x128xf32, #tpu.memory_space<vmem>>, vector<4x128xf32>
    tpu.vector_store %arg7[%c0_18, %c0_19], %30 {strides = array<i32>} : memref<4x128xf32, #tpu.memory_space<vmem>>, vector<4x128xf32>,
    %c0_20 = arith.constant 0 : index
    %c0_21 = arith.constant 0 : index
    %32 = vector.load %arg8[%c0_20, %c0_21] : memref<4x128xf32, #tpu.memory_space<vmem>>, vector<4x128xf32>
    %33 = arith.mulf %28, %28 : vector<4x128xf32>
    %34 = arith.addf %32, %33 : vector<4x128xf32>
    %c0_22 = arith.constant 0 : index
    %c0_23 = arith.constant 0 : index
    %35 = vector.load %arg8[%c0_22, %c0_23] : memref<4x128xf32, #tpu.memory_space<vmem>>, vector<4x128xf32>
    tpu.vector_store %arg8[%c0_22, %c0_23], %34 {strides = array<i32>} : memref<4x128xf32, #tpu.memory_space<vmem>>, vector<4x128xf32>,
    %c0_i32_24 = arith.constant 0 : i32
    %36 = arith.cmpi eq, %arg2, %c0_i32_24 : i32
    %37 = arith.extui %36 : i1 to i32
    %c0_i32_25 = arith.constant 0 : i32
    %38 = arith.cmpi ne, %37, %c0_i32_25 : i32
    scf.if %38 {
      %c0_26 = arith.constant 0 : index
      %c0_27 = arith.constant 0 : index
      %39 = vector.load %arg7[%c0_26, %c0_27] : memref<4x128xf32, #tpu.memory_space<vmem>>, vector<4x128xf32>
      %cst = arith.constant dense<0.000000e+00> : vector<4xf32>
      %40 = vector.multi_reduction <add>, %39, %cst [1] : vector<4x128xf32> to vector<4xf32>
      %41 = vector.shape_cast %40 : vector<4xf32> to vector<4x1xf32>
      %c0_28 = arith.constant 0 : index
      %c0_29 = arith.constant 0 : index
      %42 = vector.load %arg8[%c0_28, %c0_29] : memref<4x128xf32, #tpu.memory_space<vmem>>, vector<4x128xf32>
      %cst_30 = arith.constant dense<0.000000e+00> : vector<4xf32>
      %43 = vector.multi_reduction <add>, %42, %cst_30 [1] : vector<4x128xf32> to vector<4xf32>
      %44 = vector.shape_cast %43 : vector<4xf32> to vector<4x1xf32>
      %45 = tpu.concatenate %41, %44 in 1 : vector<4x1xf32>, vector<4x1xf32> -> vector<4x2xf32>
      %c0_31 = arith.constant 0 : index
      %c0_32 = arith.constant 0 : index
      %c0_33 = arith.constant 0 : index
      %c0_34 = arith.constant 0 : index
      %46 = vector.load %arg6[%c0_31, %c0_32, %c0_33, %c0_34] : memref<1x1x4x2xf32, #tpu.memory_space<vmem>>, vector<1x1x4x2xf32>
      %47 = vector.shape_cast %46 : vector<1x1x4x2xf32> to vector<4x2xf32>
      %48 = vector.shape_cast %45 : vector<4x2xf32> to vector<1x1x4x2xf32>
      tpu.vector_store %arg6[%c0_31, %c0_32, %c0_33, %c0_34], %48 {strides = array<i32>} : memref<1x1x4x2xf32, #tpu.memory_space<vmem>>, vector<1x1x4x2xf32>,
    } else {
    }
    return
  }
  func.func @transform_0(%arg0: i32, %arg1: i32, %arg2: i32) -> (i32, i32, i32) {
    %c1_i32 = arith.constant 1 : i32
    %0 = arith.muli %arg1, %c1_i32 : i32
    %1 = arith.addi %0, %arg2 : i32
    %c0_i32 = arith.constant 0 : i32
    %c0_i32_0 = arith.constant 0 : i32
    return %arg0, %c0_i32, %1 : i32, i32, i32
  }
  func.func @transform_1(%arg0: i32, %arg1: i32, %arg2: i32) -> (i32, i32) {
    %c0_i32 = arith.constant 0 : i32
    %c0_i32_0 = arith.constant 0 : i32
    %c0_i32_1 = arith.constant 0 : i32
    return %c0_i32, %c0_i32_0 : i32, i32
  }
  func.func @transform_2(%arg0: i32, %arg1: i32, %arg2: i32) -> (i32, i32, i32) {
    %c1_i32 = arith.constant 1 : i32
    %0 = arith.muli %arg1, %c1_i32 : i32
    %1 = arith.addi %0, %arg2 : i32
    %c0_i32 = arith.constant 0 : i32
    %c0_i32_0 = arith.constant 0 : i32
    return %arg0, %c0_i32, %1 : i32, i32, i32
  }
  func.func @transform_3(%arg0: i32, %arg1: i32, %arg2: i32) -> (i32, i32, i32, i32) {
    %c0_i32 = arith.constant 0 : i32
    %c0_i32_0 = arith.constant 0 : i32
    %c0_i32_1 = arith.constant 0 : i32
    return %arg0, %arg1, %c0_i32, %c0_i32_0 : i32, i32, i32, i32
  }
}

</mosaic_0001>

<llo_original>
// kernel: tpu_custom_call.1
$region0: #{tpu_custom_call.1}
  #allocation0 [shape = 'u32[]', space=smem, size = 0x4, offset = 0x4, fixed_abs, tag = 'smem constant byte address 0x4 - core index']
  #allocation1 [shape = 'u32[72,128]{1,0:T(1,128)}', space=vmem, size = 0x9000, scoped, tag = 'internal scratch']
  #allocation2 [shape = 'f32[4,128]{1,0:T(4,128)}', space=vmem, size = 0x800, scoped, tag = 'scratch operand']
  #allocation3 [shape = 'f32[4,128]{1,0:T(4,128)}', space=vmem, size = 0x800, scoped, tag = 'scratch operand']
  %s0 = inlined_call_operand.hbm [shape: f32[2,4,256], index: 0, kind: input, shape index: {}]
  %s1 = inlined_call_operand.hbm [shape: f32[4,3], index: 1, kind: input, shape index: {}]
  %s2 = inlined_call_operand.hbm [shape: f32[2,4,256], index: 2, kind: output, shape index: {0}]
  %s3 = inlined_call_operand.vmem [shape: f32[2,1,4,2], index: 3, kind: output, shape index: {1}]
  %4 = xla_tuple %s2, %s3
  %s5 = sld [smem:[#allocation0]]
  $region65: #{tpu_custom_call.1} parent=0
    _
  %s7 = ssub.s32 1, %s5
  %s8 = scalar_select 0, %s7, %s5
  $region1: #{tpu_custom_call.1} parent=0
    #allocation4 [shape = 'u8[8192]{0}', space=vmem, size = 0x2000, scoped, tag = 'input window, operand 0']
    #allocation5 [shape = 's32[2]{0}', space=sflag, size = 0x8, scoped, tag = 'scoped memory for tpu_custom_call.1']
    #allocation6 [shape = 's32[2]{0}', space=sflag, size = 0x8, scoped, tag = 'scoped memory for tpu_custom_call.1']
    #allocation7 [shape = 'u8[2048]{0}', space=vmem, size = 0x800, scoped, tag = 'input window, operand 1, single buffered']
    #allocation8 [shape = 's32[1]{0}', space=sflag, size = 0x4, scoped, tag = 'scoped memory for tpu_custom_call.1']
    #allocation9 [shape = 'u8[8192]{0}', space=vmem, size = 0x2000, scoped, tag = 'output window, operand 0']
    %9 = vsyncpa [#allocation5], 0
    %s10 = scalar_lea.sflag [#allocation5], 1
    %11 = vsyncpa %s10, 0
    %12 = vsyncpa [#allocation8], 0
    %13 = vsyncpa [#allocation6], 0
    %s14 = scalar_lea.sflag [#allocation6], 1
    %15 = vsyncpa %s14, 0
    loop: start=0, step=1, limit=4
    $region2: #{tpu_custom_call.1} parent=1 // loop_pre_header
      _
    $region3: #{tpu_custom_call.1} parent=1 // loop_header
      %s17 = sphi 0, %s21
      %p18 = scmp.ge.s32.totalorder %s17, 4
      %s24 = sphi 0, %s43
      %s25 = sphi 0, %s39
      %s26 = sphi 0, %s35
      %s27 = sphi 0, %s24
      %s28 = sphi 0, %s25
      %s29 = sphi 0, %s26
      %s30 = sphi 0, %s27
      %s31 = sphi 0, %s28
      %s32 = sphi 0, %s29
      %s50 = sphi 0, %s52
      %s53 = sphi 0, %s50
      %s54 = sphi 0, %s53
      %s70 = sphi 0, %s54
      %s74 = sphi 0, %s74
      %s76 = sphi 0, %s74
      %s77 = sphi 0, %s76
      %s91 = sphi 0, %s77
      %s101 = sphi 0, %s103
      %s104 = sphi 0, %s101
      %s105 = sphi 0, %s104
      %s121 = sphi 0, %s105
      %s129 = sphi 0, %s131
      %s132 = sphi 0, %s129
      %s133 = sphi 0, %s132
      %s149 = sphi 0, %s133
    $region4: #{tpu_custom_call.1} parent=1 // loop_header_branch
      %20 = sbr.rel (%p18) target = $region8
    $region5: #{tpu_custom_call.1} parent=1 // loop_body
      %s22 = ssub.s32 %s17, 1
      %s23 = ssub.s32 %s17, 2
      %s33 = sadd.s32 1, %s26
      %p34 = scmp.ge.s32.totalorder %s33, 1
      %s35 = scalar_select %p34, 0, %s33
      %s36 = sadd.s32 1, %s25
      %s37 = scalar_select %p34, %s36, %s25
      %p38 = scmp.ge.s32.totalorder %s37, 1
      %s39 = scalar_select %p38, 0, %s37
      %s40 = sadd.s32 1, %s24
      %s41 = scalar_select %p38, %s40, %s24
      %p42 = scmp.ge.s32.totalorder %s41, 2
      %s43 = scalar_select %p42, 0, %s41
      %s44 = sadd.s32 %s25, %s26
      %s45 = sadd.s32 %s39, %s35
      %s46 = ssub.s32 %s24, %s43
      %s47 = ssub.s32 %s44, %s45
      %s48 = sor.u32 %s46, %s47
      %p49 = scmp.eq.s32.totalorder %s48, 0
      %s51 = sadd.s32 %s50, 1
      %s52 = scalar_select %p49, %s50, %s51
      %p55 = pneg %p49
      %p56 = scmp.eq.s32.totalorder %s17, 1
      %p57 = por %p55, %p56
      %p58 = scmp.ne.s32.totalorder %s50, %s53
      %p59 = scmp.eq.s32.totalorder %s17, 0
      %p60 = por %p58, %p59
      %p61 = scmp.ne.s32.totalorder %s50, %s53
      %p62 = scmp.eq.s32.totalorder %s22, 1
      %p63 = por %p61, %p62
      %p64 = scmp.ne.s32.totalorder %s53, %s54
      %p65 = scmp.eq.s32.totalorder %s22, 0
      %p66 = por %p64, %p65
      %p67 = scmp.ne.s32.totalorder %s53, %s54
      %p68 = scmp.eq.s32.totalorder %s23, 1
      %p69 = por %p67, %p68
      %p71 = scmp.ne.s32.totalorder %s54, %s70
      %p72 = scmp.eq.s32.totalorder %s23, 0
      %p73 = por %p71, %p72
      %s75 = sadd.s32 %s74, 1
      %p78 = scmp.eq.s32.totalorder %s17, 1
      %p79 = scmp.ne.s32.totalorder %s74, %s76
      %p80 = scmp.eq.s32.totalorder %s17, 0
      %p81 = por %p79, %p80
      %p82 = scmp.ne.s32.totalorder %s74, %s76
      %p83 = scmp.eq.s32.totalorder %s22, 1
      %p84 = por %p82, %p83
      %p85 = scmp.ne.s32.totalorder %s76, %s77
      %p86 = scmp.eq.s32.totalorder %s22, 0
      %p87 = por %p85, %p86
      %p88 = scmp.ne.s32.totalorder %s76, %s77
      %p89 = scmp.eq.s32.totalorder %s23, 1
      %p90 = por %p88, %p89
      %p92 = scmp.ne.s32.totalorder %s77, %s91
      %p93 = scmp.eq.s32.totalorder %s23, 0
      %p94 = por %p92, %p93
      %s95 = sadd.s32 %s25, %s26
      %s96 = sadd.s32 %s39, %s35
      %s97 = ssub.s32 %s24, %s43
      %s98 = ssub.s32 %s95, %s96
      %s99 = sor.u32 %s97, %s98
      %p100 = scmp.eq.s32.totalorder %s99, 0
      %s102 = sadd.s32 %s101, 1
      %s103 = scalar_select %p100, %s101, %s102
      %p106 = pneg %p100
      %p107 = scmp.eq.s32.totalorder %s17, 1
      %p108 = por %p106, %p107
      %p109 = scmp.ne.s32.totalorder %s101, %s104
      %p110 = scmp.eq.s32.totalorder %s17, 0
      %p111 = por %p109, %p110
      %p112 = scmp.ne.s32.totalorder %s101, %s104
      %p113 = scmp.eq.s32.totalorder %s22, 1
      %p114 = por %p112, %p113
      %p115 = scmp.ne.s32.totalorder %s104, %s105
      %p116 = scmp.eq.s32.totalorder %s22, 0
      %p117 = por %p115, %p116
      %p118 = scmp.ne.s32.totalorder %s104, %s105
      %p119 = scmp.eq.s32.totalorder %s23, 1
      %p120 = por %p118, %p119
      %p122 = scmp.ne.s32.totalorder %s105, %s121
      %p123 = scmp.eq.s32.totalorder %s23, 0
      %p124 = por %p122, %p123
      %s125 = ssub.s32 %s24, %s43
      %s126 = ssub.s32 %s25, %s39
      %s127 = sor.u32 %s125, %s126
      %p128 = scmp.eq.s32.totalorder %s127, 0
      %s130 = sadd.s32 %s129, 1
      %s131 = scalar_select %p128, %s129, %s130
      %p134 = pneg %p128
      %p135 = scmp.eq.s32.totalorder %s17, 1
      %p136 = por %p134, %p135
      %p137 = scmp.ne.s32.totalorder %s129, %s132
      %p138 = scmp.eq.s32.totalorder %s17, 0
      %p139 = por %p137, %p138
      %p140 = scmp.ne.s32.totalorder %s129, %s132
      %p141 = scmp.eq.s32.totalorder %s22, 1
      %p142 = por %p140, %p141
      %p143 = scmp.ne.s32.totalorder %s132, %s133
      %p144 = scmp.eq.s32.totalorder %s22, 0
      %p145 = por %p143, %p144
      %p146 = scmp.ne.s32.totalorder %s132, %s133
      %p147 = scmp.eq.s32.totalorder %s23, 1
      %p148 = por %p146, %p147
      %p150 = scmp.ne.s32.totalorder %s133, %s149
      %p151 = scmp.eq.s32.totalorder %s23, 0
      %p152 = por %p150, %p151
      %p153 = scmp.le.s32.totalorder 1, %s17
      %p154 = scmp.lt.s32.totalorder %s17, 3
      %p155 = pnand %p153, %p154
      %p156 = pneg %p155
      // Predicated region
      $region9: #{tpu_custom_call.1} parent=5 // pred_check
        _
      $region10: #{tpu_custom_call.1} parent=5 // pred_check_branch
        %158 = sbr.rel (%p155) target = $region12
      $region11: #{tpu_custom_call.1} parent=5 // pred_region
        %s159 = ssub.s32 %s17, 1
        // Predicated region
        $region13: #{tpu_custom_call.1} parent=11 // pred_check
          %p160 = pneg %p87
        $region14: #{tpu_custom_call.1} parent=11 // pred_check_branch
          %162 = sbr.rel (%p160) target = $region16
        $region15: #{tpu_custom_call.1} parent=11 // pred_region
          %164 = vsyncadd [#allocation8], 0
          %s166 = sshll.u32 %s1, 4
          %s167 = int_to_ptr.hbm [resolvable:$true] %s166
          %s168 = sshll.u32 [#allocation7], 4
          %s169 = int_to_ptr.vmem [resolvable:$true] %s168
          %171 = dma.hbm_to_vmem [thread:$0]  %s167, 64, %s169, [#allocation8]
        $region16: #{tpu_custom_call.1} parent=11 // pred_fallthru
          _
      $region12: #{tpu_custom_call.1} parent=5 // pred_fallthru
        _
      %p172 = scmp.lt.s32.totalorder %s17, 2
      // Predicated region
      $region17: #{tpu_custom_call.1} parent=5 // pred_check
        %p173 = pneg %p172
      $region18: #{tpu_custom_call.1} parent=5 // pred_check_branch
        %175 = sbr.rel (%p173) target = $region20
      $region19: #{tpu_custom_call.1} parent=5 // pred_region
        // Predicated region
        $region21: #{tpu_custom_call.1} parent=19 // pred_check
          %p176 = pneg %p60
        $region22: #{tpu_custom_call.1} parent=19 // pred_check_branch
          %178 = sbr.rel (%p176) target = $region24
        $region23: #{tpu_custom_call.1} parent=19 // pred_region
          %s179 = sand.u32 %s50, 1
          %s180 = scalar_lea.sflag [#allocation5], %s179
          %s181 = sand.u32 %s50, 1
          %s182 = smul.addr %s181, 8
          %s183 = scalar_lea.vmem [#allocation4], %s182
          %s184 = sadd.s32 %s25, %s26
          %s185 = smul.u32 2, %s184
          %187 = vsyncadd %s180, 0
          %s188 = smul.addr %s24, 2
          %s189 = sadd.s32 %s185, %s188
          %s190 = smul.addr %s189, 4
          %s191 = scalar_lea.hbm %s0, %s190
          %s193 = sshll.u32 %s191, 4
          %s194 = int_to_ptr.hbm [resolvable:$true] %s193
          %s195 = sshll.u32 %s183, 4
          %s196 = int_to_ptr.vmem [resolvable:$true] %s195
          %198 = dma.hbm_to_vmem [thread:$0]  %s194, 128, %s196, %s180
        $region24: #{tpu_custom_call.1} parent=19 // pred_fallthru
          _
      $region20: #{tpu_custom_call.1} parent=5 // pred_fallthru
        _
      %p199 = scmp.le.s32.totalorder 1, %s17
      %p200 = scmp.lt.s32.totalorder %s17, 3
      %p201 = pnand %p199, %p200
      %p202 = pneg %p201
      // Predicated region
      $region25: #{tpu_custom_call.1} parent=5 // pred_check
        _
      $region26: #{tpu_custom_call.1} parent=5 // pred_check_branch
        %204 = sbr.rel (%p201) target = $region28
      $region27: #{tpu_custom_call.1} parent=5 // pred_region
        %s205 = ssub.s32 %s17, 1
        %s206 = sand.u32 %s53, 1
        %s207 = scalar_lea.sflag [#allocation5], %s206
        %s208 = sand.u32 %s53, 1
        %s209 = smul.addr %s208, 8
        %s210 = scalar_lea.vmem [#allocation4], %s209
        // Predicated region
        $region29: #{tpu_custom_call.1} parent=27 // pred_check
          %p211 = pneg %p66
        $region30: #{tpu_custom_call.1} parent=27 // pred_check_branch
          %213 = sbr.rel (%p211) target = $region32
        $region31: #{tpu_custom_call.1} parent=27 // pred_region
          %215 = dma.done %s207, 128
        $region32: #{tpu_custom_call.1} parent=27 // pred_fallthru
          _
        // Predicated region
        $region33: #{tpu_custom_call.1} parent=27 // pred_check
          %p216 = pneg %p87
        $region34: #{tpu_custom_call.1} parent=27 // pred_check_branch
          %218 = sbr.rel (%p216) target = $region36
        $region35: #{tpu_custom_call.1} parent=27 // pred_region
          %220 = dma.done [#allocation8], 64
        $region36: #{tpu_custom_call.1} parent=27 // pred_fallthru
          _
        %s221 = sand.u32 %s53, 1
        %s222 = scalar_lea.sflag [#allocation5], %s221
        %s223 = sand.u32 %s53, 1
        %s224 = smul.addr %s223, 8
        %s225 = scalar_lea.vmem [#allocation4], %s224
        %p226 = pneg %p66
        %p227 = pneg %p63
        %p228 = pneg %p87
        %p229 = pneg %p84
        %p230 = pneg %p117
        %p231 = pneg %p114
        %s232 = sand.u32 %s104, 1
        %s233 = scalar_lea.sflag [#allocation6], %s232
        %s234 = sand.u32 %s104, 1
        %s235 = smul.addr %s234, 8
        %s236 = scalar_lea.vmem [#allocation9], %s235
        %p237 = pneg %p145
        %p238 = pneg %p142
        %p239 = scmp.lt.s32.totalorder %s27, 1
        %s240 = scalar_select %p239, %s27, 1
        %p241 = scmp.lt.s32.totalorder %s28, 0
        %s242 = scalar_select %p241, %s28, 0
        %s243 = sadd.s32 %s242, %s240
        %s244 = smul.addr %s243, 4
        %s245 = scalar_lea.vmem %s3, %s244
        %s246 = sadd.s32 %s28, %s29
        %s247 = smul.u32 2, %s246
        %s248 = sadd.s32 %s28, %s29
        %s249 = smul.u32 2, %s248
        %p250 = scmp.lt.s32.totalorder %s27, 1
        %s251 = scalar_select %p250, %s27, 1
        %p252 = scmp.lt.s32.totalorder %s28, 0
        %s253 = scalar_select %p252, %s28, 0
        %s254 = sadd.s32 %s253, %s251
        %s255 = smul.addr %s254, 4
        %s256 = scalar_lea.vmem %s3, %s255
        %p257 = scmp.eq.s32.totalorder %s29, 0
        // Predicated region
        $region37: #{tpu_custom_call.1} parent=27 // pred_check
          %p258 = pneg %p257
        $region38: #{tpu_custom_call.1} parent=27 // pred_check_branch
          %260 = sbr.rel (%p258) target = $region40
        $region39: #{tpu_custom_call.1} parent=27 // pred_region
          %261 = vst [vmem:[#allocation2] sm:$0xf] 0.0
          %262 = vst [vmem:[#allocation3] sm:$0xf] 0.0
        $region40: #{tpu_custom_call.1} parent=27 // pred_fallthru
          _
        %v263 = vld [vmem:[#allocation7] sm:$0xf]
        %v264 = vld [vmem:[%s210] sm:$0xff]
        %266 = vset.pattern.permute.xlu0 0
        %267 = vperm.xlu0 %266, %v263
        %v268 = vpop.permute.xlu0 %267
        %v270 = vunpack.c.l.s4 839922192
        %v271 = vunpack.c.0.s8 %v270
        %v272 = vperm.slane %v268, %v271
        %v274 = vmul.f32 %v264, %v272
        %275 = vset.pattern.permute.xlu0 1
        %276 = vperm.xlu0 %275, %v263
        %v277 = vpop.permute.xlu0 %276
        %v279 = vunpack.c.l.s4 839922192
        %v280 = vunpack.c.0.s8 %v279
        %v281 = vperm.slane %v277, %v280
        %v283 = vadd.f32 %v274, %v281
        %284 = vst [vmem:[%s236] sm:$0xff] %v283
        %285 = vset.pattern.permute.xlu0 2
        %286 = vperm.xlu0 %285, %v263
        %v287 = vpop.permute.xlu0 %286
        %v289 = vsub.f32 %v264, %v287
        %v290 = vld [vmem:[#allocation2] sm:$0xf]
        %v291 = vadd.f32 %v290, %v289
        %292 = vst [vmem:[#allocation2] sm:$0xf] %v291
        %v293 = vld [vmem:[#allocation3] sm:$0xf]
        %v294 = vmul.f32 %v289, %v289
        %v295 = vadd.f32 %v293, %v294
        %296 = vst [vmem:[#allocation3] sm:$0xf] %v295
        %v298 = vrot.slane %v264, 4
        %v300 = vsub.f32 %v298, %v287
        %v301 = vld [vmem:[#allocation2] sm:$0xf]
        %v302 = vadd.f32 %v301, %v300
        %303 = vst [vmem:[#allocation2] sm:$0xf] %v302
        %v304 = vld [vmem:[#allocation3] sm:$0xf]
        %v305 = vmul.f32 %v300, %v300
        %v306 = vadd.f32 %v304, %v305
        %307 = vst [vmem:[#allocation3] sm:$0xf] %v306
        // Predicated region
        $region41: #{tpu_custom_call.1} parent=27 // pred_check
          %p308 = pneg %p257
        $region42: #{tpu_custom_call.1} parent=27 // pred_check_branch
          %310 = sbr.rel (%p308) target = $region44
        $region43: #{tpu_custom_call.1} parent=27 // pred_region
          %v311 = vld [vmem:[#allocation2] sm:$0xf]
          %vm312 = vcmask 1043456
          %v313 = vsel %vm312, %v311, 0.0
          %314 = vadd.xlane.f32.xlu0 %v313
          %v315 = vpop.xlane.xlu0 %314
          %v316 = vld [vmem:[#allocation3] sm:$0xf]
          %v317 = vsel %vm312, %v316, 0.0
          %318 = vadd.xlane.f32.xlu0 %v317
          %v319 = vpop.xlane.xlu0 %318
          %vm320 = vcmask 7168
          %v321 = vsel %vm320, %v315, %v319
          %vm322 = vcmask 11264
          %323 = vst.msk [vmem:[%s256] sm:$0xf] %vm322, %v321
        $region44: #{tpu_custom_call.1} parent=27 // pred_fallthru
          _
        %s324 = sand.u32 %s104, 1
        %s325 = scalar_lea.sflag [#allocation6], %s324
        %s326 = sand.u32 %s104, 1
        %s327 = smul.addr %s326, 8
        %s328 = scalar_lea.vmem [#allocation9], %s327
        %p329 = scmp.lt.s32.totalorder %s27, 1
        %s330 = scalar_select %p329, %s27, 1
        %p331 = scmp.lt.s32.totalorder %s28, 0
        %s332 = scalar_select %p331, %s28, 0
        %s333 = sadd.s32 %s332, %s330
        %s334 = smul.addr %s333, 4
        %s335 = scalar_lea.vmem %s3, %s334
        // Predicated region
        $region45: #{tpu_custom_call.1} parent=27 // pred_check
          %p336 = pneg %p114
        $region46: #{tpu_custom_call.1} parent=27 // pred_check_branch
          %338 = sbr.rel (%p336) target = $region48
        $region47: #{tpu_custom_call.1} parent=27 // pred_region
          %s339 = sadd.s32 %s28, %s29
          %s340 = smul.u32 2, %s339
          %342 = vsyncadd %s325, 0
          %s343 = smul.addr %s27, 2
          %s344 = sadd.s32 %s340, %s343
          %s345 = smul.addr %s344, 4
          %s346 = scalar_lea.hbm %s2, %s345
          %s348 = sshll.u32 %s328, 4
          %s349 = int_to_ptr.vmem [resolvable:$true] %s348
          %s350 = sshll.u32 %s346, 4
          %s351 = int_to_ptr.hbm [resolvable:$true] %s350
          %353 = dma.vmem_to_hbm [thread:$0]  %s349, 128, %s351, %s325
        $region48: #{tpu_custom_call.1} parent=27 // pred_fallthru
          _
        // Predicated region
        $region49: #{tpu_custom_call.1} parent=27 // pred_check
          %p354 = pneg %p142
        $region50: #{tpu_custom_call.1} parent=27 // pred_check_branch
          %356 = sbr.rel (%p354) target = $region52
        $region51: #{tpu_custom_call.1} parent=27 // pred_region
          _
        $region52: #{tpu_custom_call.1} parent=27 // pred_fallthru
          _
      $region28: #{tpu_custom_call.1} parent=5 // pred_fallthru
        _
      %p357 = scmp.le.s32.totalorder 2, %s17
      // Predicated region
      $region53: #{tpu_custom_call.1} parent=5 // pred_check
        %p358 = pneg %p357
      $region54: #{tpu_custom_call.1} parent=5 // pred_check_branch
        %360 = sbr.rel (%p358) target = $region56
      $region55: #{tpu_custom_call.1} parent=5 // pred_region
        %s361 = ssub.s32 %s17, 2
        // Predicated region
        $region57: #{tpu_custom_call.1} parent=55 // pred_check
          %p362 = pneg %p120
        $region58: #{tpu_custom_call.1} parent=55 // pred_check_branch
          %364 = sbr.rel (%p362) target = $region60
        $region59: #{tpu_custom_call.1} parent=55 // pred_region
          %s365 = sand.u32 %s105, 1
          %s366 = scalar_lea.sflag [#allocation6], %s365
          %s367 = sand.u32 %s105, 1
          %s368 = smul.addr %s367, 8
          %s369 = scalar_lea.vmem [#allocation9], %s368
          %371 = dma.done %s366, 128
        $region60: #{tpu_custom_call.1} parent=55 // pred_fallthru
          _
        // Predicated region
        $region61: #{tpu_custom_call.1} parent=55 // pred_check
          %p372 = pneg %p148
        $region62: #{tpu_custom_call.1} parent=55 // pred_check_branch
          %374 = sbr.rel (%p372) target = $region64
        $region63: #{tpu_custom_call.1} parent=55 // pred_region
          %p375 = scmp.lt.s32.totalorder %s30, 1
          %s376 = scalar_select %p375, %s30, 1
          %p377 = scmp.lt.s32.totalorder %s31, 0
          %s378 = scalar_select %p377, %s31, 0
          %s379 = sadd.s32 %s378, %s376
          %s380 = smul.addr %s379, 4
          %s381 = scalar_lea.vmem %s3, %s380
        $region64: #{tpu_custom_call.1} parent=55 // pred_fallthru
          _
      $region56: #{tpu_custom_call.1} parent=5 // pred_fallthru
        _
    $region6: #{tpu_custom_call.1} parent=1 // loop_footer
      %s21 = sadd.s32 1, %s17
    $region7: #{tpu_custom_call.1} parent=1 // loop_footer_branch
      %16 = sbr.rel target = $region3
    $region8: #{tpu_custom_call.1} parent=1 // loop_exit
      _
    %382 = vsyncpa [#allocation5], 1
    %s383 = scalar_lea.sflag [#allocation5], 1
    %384 = vsyncpa %s383, 1
    %385 = vsyncpa [#allocation8], 1
    %386 = vsyncpa [#allocation6], 1
    %s387 = scalar_lea.sflag [#allocation6], 1
    %388 = vsyncpa %s387, 1

</llo_original>
